<compile_context>
chip_gen: v5e
topology: v5e:2x2
jax: 0.10.0
libtpu: 0.0.40
codegen_flags: <defaults>
</compile_context>

<pallas_src>
import math
import functools

import jax
import jax.numpy as jnp
from jax.experimental import pallas as pl
from jax.experimental.pallas import tpu as pltpu


def _round_up(x, m):
    return ((x + m - 1) // m) * m


# ------------------------------------------------------------------ kernels


def _support_kernel(x_ref, w_ref, s_ref):
    # support = x @ W   (MXU, f32 accumulate, stored in compute dtype)
    s_ref[...] = jnp.dot(
        x_ref[...], w_ref[...], preferred_element_type=jnp.float32
    ).astype(s_ref.dtype)


def _aggregate_kernel(adj_ref, s_ref, b_ref, out_ref, acc_ref):
    # out[i,:] = sum_k adj[i,k] @ support[k,:] + bias   (k = reduction axis)
    k = pl.program_id(1)

    @pl.when(k == 0)
    def _():
        acc_ref[...] = jnp.zeros_like(acc_ref)

    acc_ref[...] += jnp.dot(
        adj_ref[...], s_ref[...], preferred_element_type=jnp.float32
    )

    @pl.when(k == pl.num_programs(1) - 1)
    def _():
        # Bias added once in the finalize step, not per reduction step.
        out_ref[...] = (acc_ref[...] + b_ref[...]).astype(out_ref.dtype)


# ------------------------------------------------------------------ wrapper


@functools.partial(jax.jit, static_argnames=("compute_dtype",))
def gcn_forward(x, adj, weight, bias, *, compute_dtype=jnp.bfloat16):
    n, f_in = x.shape
    f_out = weight.shape[1]
    cdt = jnp.dtype(compute_dtype)
    itemsize_c = cdt.itemsize

    # ---- lane-dense padding: feature dims -> multiples of 128 lanes ----
    f_in_p = _round_up(f_in, 128)
    f_out_p = _round_up(f_out, 128)

    # ---- tile selection for adj @ support ----
    tm = min(256, _round_up(n, 8))      # output-row tile (MXU-native-ish)
    tk = min(512, _round_up(n, 128))    # reduction tile (adj columns), large
    n_rp = _round_up(n, tm)             # padded adj rows / out rows
    n_cp = _round_up(n, tk)             # padded adj cols / support rows
    ts = 128                            # support-row tile (always divides n_cp)

    # ---- zero-pad operands (zeros contribute nothing to the matmuls) ----
    x_p = jnp.zeros((n_cp, f_in_p), cdt).at[:n, :f_in].set(x.astype(cdt))
    w_p = jnp.zeros((f_in_p, f_out_p), cdt).at[:f_in, :f_out].set(
        weight.astype(cdt)
    )
    adj_p = jnp.zeros((n_rp, n_cp), cdt).at[:n, :n].set(adj.astype(cdt))
    b_p = jnp.zeros((1, f_out_p), jnp.float32).at[0, :f_out].set(
        bias.astype(jnp.float32)
    )

    # ---- kernel 1: support = x @ W (computed once, tiled over rows) ----
    support = pl.pallas_call(
        _support_kernel,
        out_shape=jax.ShapeDtypeStruct((n_cp, f_out_p), cdt),
        grid_spec=pltpu.PrefetchScalarGridSpec(
            num_scalar_prefetch=0,
            grid=(n_cp // ts,),
            in_specs=[
                pl.BlockSpec((ts, f_in_p), lambda i: (i, 0)),
                pl.BlockSpec((f_in_p, f_out_p), lambda i: (0, 0)),
            ],
            out_specs=pl.BlockSpec((ts, f_out_p), lambda i: (i, 0)),
        ),
        compiler_params=pltpu.CompilerParams(
            dimension_semantics=("parallel",),
        ),
        cost_estimate=pl.CostEstimate(
            flops=2 * n_cp * f_in_p * f_out_p,
            transcendentals=0,
            bytes_accessed=int(
                (n_cp * f_in_p + f_in_p * f_out_p + n_cp * f_out_p) * itemsize_c
            ),
        ),
    )(x_p, w_p)

    # ---- kernel 2: out = adj @ support + bias (tiled, f32 accumulator) ----
    grid = (n_rp // tm, n_cp // tk)

    vmem_need = (
        2 * tm * tk * itemsize_c          # adj tiles (double-buffered)
        + 2 * tk * f_out_p * itemsize_c   # support tiles
        + 2 * tm * f_out_p * 4            # out tiles
        + tm * f_out_p * 4                # f32 accumulator
        + 2 * f_out_p * 4                 # bias
    )
    vmem_limit = min(max(2 * vmem_need, 16 * 1024 * 1024), 48 * 1024 * 1024)

    out_p = pl.pallas_call(
        _aggregate_kernel,
        out_shape=jax.ShapeDtypeStruct((n_rp, f_out_p), jnp.float32),
        grid_spec=pltpu.PrefetchScalarGridSpec(
            num_scalar_prefetch=0,
            grid=grid,
            in_specs=[
                pl.BlockSpec((tm, tk), lambda i, k: (i, k)),
                pl.BlockSpec((tk, f_out_p), lambda i, k: (k, 0)),
                pl.BlockSpec((1, f_out_p), lambda i, k: (0, 0)),
            ],
            out_specs=pl.BlockSpec((tm, f_out_p), lambda i, k: (i, 0)),
            scratch_shapes=[pltpu.VMEM((tm, f_out_p), jnp.float32)],
        ),
        compiler_params=pltpu.CompilerParams(
            dimension_semantics=("parallel", "arbitrary"),
            vmem_limit_bytes=int(vmem_limit),
        ),
        cost_estimate=pl.CostEstimate(
            flops=2 * n_rp * n_cp * f_out_p,
            transcendentals=0,
            bytes_accessed=int(
                n_rp * n_cp * itemsize_c                     # adj (dominant)
                + grid[0] * n_cp * f_out_p * itemsize_c      # support re-reads
                + n_rp * f_out_p * 4                         # out
                + f_out_p * 4                                # bias
            ),
        ),
    )(adj_p, support, b_p)

    # Strip padding.
    return out_p[:n, :f_out]


# ------------------------------------------------------------------ params


def init_gcn_params(key, in_features, out_features):
    """Mirrors kaiming_reset_parameters on a [in, out] weight tensor.

    torch fan_in of a (in, out) 2-D tensor is size(1) = out_features, so
    kaiming_uniform_(a=sqrt(5)) -> bound = 1/sqrt(out_features); bias is
    uniform(-bound, bound).
    """
    k_w, k_b = jax.random.split(key)
    fan_in = out_features
    bound = 1.0 / math.sqrt(fan_in)
    weight = jax.random.uniform(
        k_w, (in_features, out_features), jnp.float32, -bound, bound
    )
    bias = jax.random.uniform(k_b, (out_features,), jnp.float32, -bound, bound)
    return weight, bias


if __name__ == "__main__":
    # Small graph: N nodes, in_features -> out_features
    N = 16
    IN_FEATURES = 32
    OUT_FEATURES = 32

    key = jax.random.PRNGKey(0)
    k_x, k_adj, k_param = jax.random.split(key, 3)

    x = jax.random.normal(k_x, (N, IN_FEATURES), jnp.float32)

    # Symmetric, row-normalized adjacency with self loops (dense).
    a = (jax.random.uniform(k_adj, (N, N)) < 0.3).astype(jnp.float32)
    a = jnp.maximum(a, a.T) + jnp.eye(N, dtype=jnp.float32)
    deg = jnp.sum(a, axis=1, keepdims=True)
    adj = a / deg

    weight, bias = init_gcn_params(k_param, IN_FEATURES, OUT_FEATURES)

    # Default path: bf16 MXU inputs, f32 accumulation / output.
    out_bf16 = gcn_forward(x, adj, weight, bias)
    out_bf16 = jax.block_until_ready(out_bf16)

    # f32 compute path (same kernels) for a tight-tolerance correctness check.
    out_f32 = gcn_forward(x, adj, weight, bias, compute_dtype=jnp.float32)
    out_f32 = jax.block_until_ready(out_f32)

    # Reference in plain JAX.
    ref = adj @ (x @ weight) + bias[None, :]

    assert out_bf16.shape == (N, OUT_FEATURES)
    assert out_f32.shape == (N, OUT_FEATURES)
    assert jnp.allclose(out_f32, ref, atol=1e-4, rtol=1e-4)
    # bf16 MXU inputs are an intentional precision trade -> loose tolerance.
    assert jnp.allclose(out_bf16, ref, atol=5e-2, rtol=5e-2)

    print("KERNEL_OK")
</pallas_src>

<mosaic_0001>
module attributes {stable_mosaic.version = 11 : i64} {
  func.func @_support_kernel(%arg0: i32, %arg1: memref<128x128xbf16, #tpu.memory_space<vmem>>, %arg2: memref<128x128xbf16, #tpu.memory_space<vmem>>, %arg3: memref<128x128xbf16, #tpu.memory_space<vmem>>) attributes {dimension_semantics = [#tpu.dimension_semantics<parallel>], iteration_bounds = array<i64: 1>, scalar_prefetch = 0 : i64, scratch_operands = 0 : i64, tpu.core_type = #tpu.core_type<tc>, window_params = [{transform_indices = @transform_0, window_bounds = array<i64: 128, 128>}, {pipeline_mode = #tpu.pipeline_mode<synchronous>, transform_indices = @transform_1, window_bounds = array<i64: 128, 128>}, {transform_indices = @transform_2, window_bounds = array<i64: 128, 128>}]} {
    %c0 = arith.constant 0 : index
    %c0_0 = arith.constant 0 : index
    %0 = vector.load %arg1[%c0, %c0_0] : memref<128x128xbf16, #tpu.memory_space<vmem>>, vector<128x128xbf16>
    %c0_1 = arith.constant 0 : index
    %c0_2 = arith.constant 0 : index
    %1 = vector.load %arg2[%c0_1, %c0_2] : memref<128x128xbf16, #tpu.memory_space<vmem>>, vector<128x128xbf16>
    %cst = arith.constant dense<0.000000e+00> : vector<128x128xf32>
    %2 = tpu.matmul %0, %1, %cst {dimension_numbers = #tpu.dot_dimension_numbers<[1], [0], [0], [1], [0, 0, 1, 1], [], []>} : vector<128x128xbf16>, vector<128x128xbf16>, vector<128x128xf32> -> vector<128x128xf32>
    %3 = arith.truncf %2 : vector<128x128xf32> to vector<128x128xbf16>
    %c0_3 = arith.constant 0 : index
    %c0_4 = arith.constant 0 : index
    %4 = vector.load %arg3[%c0_3, %c0_4] : memref<128x128xbf16, #tpu.memory_space<vmem>>, vector<128x128xbf16>
    tpu.vector_store %arg3[%c0_3, %c0_4], %3 {strides = array<i32>} : memref<128x128xbf16, #tpu.memory_space<vmem>>, vector<128x128xbf16>,
    return
  }
  func.func @transform_0(%arg0: i32) -> (i32, i32) {
    %c0_i32 = arith.constant 0 : i32
    %c0_i32_0 = arith.constant 0 : i32
    return %arg0, %c0_i32 : i32, i32
  }
  func.func @transform_1(%arg0: i32) -> (i32, i32) {
    %c0_i32 = arith.constant 0 : i32
    %c0_i32_0 = arith.constant 0 : i32
    %c0_i32_1 = arith.constant 0 : i32
    return %c0_i32, %c0_i32_0 : i32, i32
  }
  func.func @transform_2(%arg0: i32) -> (i32, i32) {
    %c0_i32 = arith.constant 0 : i32
    %c0_i32_0 = arith.constant 0 : i32
    return %arg0, %c0_i32 : i32, i32
  }
}

module attributes {stable_mosaic.version = 11 : i64} {
  func.func @_aggregate_kernel(%arg0: i32, %arg1: i32, %arg2: memref<16x128xbf16, #tpu.memory_space<vmem>>, %arg3: memref<128x128xbf16, #tpu.memory_space<vmem>>, %arg4: memref<1x128xf32, #tpu.memory_space<vmem>>, %arg5: memref<16x128xf32, #tpu.memory_space<vmem>>, %arg6: memref<16x128xf32, #tpu.memory_space<vmem>>) attributes {dimension_semantics = [#tpu.dimension_semantics<parallel>, #tpu.dimension_semantics<arbitrary>], iteration_bounds = array<i64: 1, 1>, scalar_prefetch = 0 : i64, scratch_operands = 1 : i64, tpu.core_type = #tpu.core_type<tc>, window_params = [{transform_indices = @transform_0, window_bounds = array<i64: 16, 128>}, {transform_indices = @transform_1, window_bounds = array<i64: 128, 128>}, {pipeline_mode = #tpu.pipeline_mode<synchronous>, transform_indices = @transform_2, window_bounds = array<i64: 1, 128>}, {transform_indices = @transform_3, window_bounds = array<i64: 16, 128>}]} {
    %c0_i32 = arith.constant 0 : i32
    %0 = arith.cmpi eq, %arg1, %c0_i32 : i32
    %1 = arith.extui %0 : i1 to i32
    %c0_i32_0 = arith.constant 0 : i32
    %2 = arith.cmpi ne, %1, %c0_i32_0 : i32
    scf.if %2 {
      %cst_10 = arith.constant 0.000000e+00 : f32
      %12 = vector.broadcast %cst_10 : f32 to vector<16x128xf32>
      %c0_11 = arith.constant 0 : index
      %c0_12 = arith.constant 0 : index
      %13 = vector.load %arg6[%c0_11, %c0_12] : memref<16x128xf32, #tpu.memory_space<vmem>>, vector<16x128xf32>
      tpu.vector_store %arg6[%c0_11, %c0_12], %12 {strides = array<i32>} : memref<16x128xf32, #tpu.memory_space<vmem>>, vector<16x128xf32>,
    } else {
    }
    %c0 = arith.constant 0 : index
    %c0_1 = arith.constant 0 : index
    %3 = vector.load %arg6[%c0, %c0_1] : memref<16x128xf32, #tpu.memory_space<vmem>>, vector<16x128xf32>
    %c0_2 = arith.constant 0 : index
    %c0_3 = arith.constant 0 : index
    %4 = vector.load %arg2[%c0_2, %c0_3] : memref<16x128xbf16, #tpu.memory_space<vmem>>, vector<16x128xbf16>
    %c0_4 = arith.constant 0 : index
    %c0_5 = arith.constant 0 : index
    %5 = vector.load %arg3[%c0_4, %c0_5] : memref<128x128xbf16, #tpu.memory_space<vmem>>, vector<128x128xbf16>
    %cst = arith.constant dense<0.000000e+00> : vector<16x128xf32>
    %6 = tpu.matmul %4, %5, %cst {dimension_numbers = #tpu.dot_dimension_numbers<[1], [0], [0], [1], [0, 0, 1, 1], [], []>} : vector<16x128xbf16>, vector<128x128xbf16>, vector<16x128xf32> -> vector<16x128xf32>
    %7 = arith.addf %3, %6 : vector<16x128xf32>
    %c0_6 = arith.constant 0 : index
    %c0_7 = arith.constant 0 : index
    %8 = vector.load %arg6[%c0_6, %c0_7] : memref<16x128xf32, #tpu.memory_space<vmem>>, vector<16x128xf32>
    tpu.vector_store %arg6[%c0_6, %c0_7], %7 {strides = array<i32>} : memref<16x128xf32, #tpu.memory_space<vmem>>, vector<16x128xf32>,
    %c0_i32_8 = arith.constant 0 : i32
    %9 = arith.cmpi eq, %arg1, %c0_i32_8 : i32
    %10 = arith.extui %9 : i1 to i32
    %c0_i32_9 = arith.constant 0 : i32
    %11 = arith.cmpi ne, %10, %c0_i32_9 : i32
    scf.if %11 {
      %c0_10 = arith.constant 0 : index
      %c0_11 = arith.constant 0 : index
      %12 = vector.load %arg6[%c0_10, %c0_11] : memref<16x128xf32, #tpu.memory_space<vmem>>, vector<16x128xf32>
      %c0_12 = arith.constant 0 : index
      %c0_13 = arith.constant 0 : index
      %13 = vector.load %arg4[%c0_12, %c0_13] : memref<1x128xf32, #tpu.memory_space<vmem>>, vector<1x128xf32>
      %14 = vector.broadcast %13 : vector<1x128xf32> to vector<16x128xf32>
      %15 = arith.addf %12, %14 : vector<16x128xf32>
      %c0_14 = arith.constant 0 : index
      %c0_15 = arith.constant 0 : index
      %16 = vector.load %arg5[%c0_14, %c0_15] : memref<16x128xf32, #tpu.memory_space<vmem>>, vector<16x128xf32>
      tpu.vector_store %arg5[%c0_14, %c0_15], %15 {strides = array<i32>} : memref<16x128xf32, #tpu.memory_space<vmem>>, vector<16x128xf32>,
    } else {
    }
    return
  }
  func.func @transform_0(%arg0: i32, %arg1: i32) -> (i32, i32) {
    %c0_i32 = arith.constant 0 : i32
    return %arg0, %arg1 : i32, i32
  }
  func.func @transform_1(%arg0: i32, %arg1: i32) -> (i32, i32) {
    %c0_i32 = arith.constant 0 : i32
    %c0_i32_0 = arith.constant 0 : i32
    return %arg1, %c0_i32 : i32, i32
  }
  func.func @transform_2(%arg0: i32, %arg1: i32) -> (i32, i32) {
    %c0_i32 = arith.constant 0 : i32
    %c0_i32_0 = arith.constant 0 : i32
    %c0_i32_1 = arith.constant 0 : i32
    return %c0_i32, %c0_i32_0 : i32, i32
  }
  func.func @transform_3(%arg0: i32, %arg1: i32) -> (i32, i32) {
    %c0_i32 = arith.constant 0 : i32
    %c0_i32_0 = arith.constant 0 : i32
    return %arg0, %c0_i32 : i32, i32
  }
}

</mosaic_0001>

<llo_original>
// kernel: gcn_forward.2
$region0: #{gcn_forward.2}
  #allocation0 [shape = 'u32[]', space=smem, size = 0x4, offset = 0x4, fixed_abs, tag = 'smem constant byte address 0x4 - core index']
  #allocation1 [shape = 'u32[72,128]{1,0:T(1,128)}', space=vmem, size = 0x9000, scoped, tag = 'internal scratch']
  %s0 = inlined_call_operand.vmem [shape: bf16[128,128], index: 0, kind: input, shape index: {}]
  %s1 = inlined_call_operand.vmem [shape: bf16[128,128], index: 1, kind: input, shape index: {}]
  %s2 = inlined_call_operand.vmem [shape: bf16[128,128], index: 2, kind: output, shape index: {}]
  %s3 = sld [smem:[#allocation0]]
  $region18: #{gcn_forward.2} parent=0
    _
  %s5 = ssub.s32 1, %s3
  %s6 = scalar_select 0, %s5, %s3
  // Predicated region
  $region2: #{gcn_forward.2} parent=0 // pred_check
    _
  $region3: #{gcn_forward.2} parent=0 // pred_check_branch
    %8 = sbr.rel (0) target = $region5
  $region4: #{gcn_forward.2} parent=0 // pred_region
    _
  $region5: #{gcn_forward.2} parent=0 // pred_fallthru
    _
  // Predicated region
  $region6: #{gcn_forward.2} parent=0 // pred_check
    _
  $region7: #{gcn_forward.2} parent=0 // pred_check_branch
    %10 = sbr.rel (0) target = $region9
  $region8: #{gcn_forward.2} parent=0 // pred_region
    _
  $region9: #{gcn_forward.2} parent=0 // pred_fallthru
    _
  %v11 = vld [vmem:[%s0] sm:$0xf]
  %v12 = vld [vmem:[%s0 + $0x4] sm:$0xf]
  %v13 = vld [vmem:[%s0 + $0x8] sm:$0xf]
  %v14 = vld [vmem:[%s0 + $0xc] sm:$0xf]
  %v15 = vld [vmem:[%s0 + $0x10] sm:$0xf]
  %v16 = vld [vmem:[%s0 + $0x14] sm:$0xf]
  %v17 = vld [vmem:[%s0 + $0x18] sm:$0xf]
  %v18 = vld [vmem:[%s0 + $0x1c] sm:$0xf]
  %v19 = vld [vmem:[%s0 + $0x20] sm:$0xf]
  %v20 = vld [vmem:[%s0 + $0x24] sm:$0xf]
  %v21 = vld [vmem:[%s0 + $0x28] sm:$0xf]
  %v22 = vld [vmem:[%s0 + $0x2c] sm:$0xf]
  %v23 = vld [vmem:[%s0 + $0x30] sm:$0xf]
  %v24 = vld [vmem:[%s0 + $0x34] sm:$0xf]
  %v25 = vld [vmem:[%s0 + $0x38] sm:$0xf]
  %v26 = vld [vmem:[%s0 + $0x3c] sm:$0xf]
  %v27 = vld [vmem:[%s1] sm:$0xf]
  %v28 = vld [vmem:[%s1 + $0x4] sm:$0xf]
  %v29 = vld [vmem:[%s1 + $0x8] sm:$0xf]
  %v30 = vld [vmem:[%s1 + $0xc] sm:$0xf]
  %v31 = vld [vmem:[%s1 + $0x10] sm:$0xf]
  %v32 = vld [vmem:[%s1 + $0x14] sm:$0xf]
  %v33 = vld [vmem:[%s1 + $0x18] sm:$0xf]
  %v34 = vld [vmem:[%s1 + $0x1c] sm:$0xf]
  %v35 = vld [vmem:[%s1 + $0x20] sm:$0xf]
  %v36 = vld [vmem:[%s1 + $0x24] sm:$0xf]
  %v37 = vld [vmem:[%s1 + $0x28] sm:$0xf]
  %v38 = vld [vmem:[%s1 + $0x2c] sm:$0xf]
  %v39 = vld [vmem:[%s1 + $0x30] sm:$0xf]
  %v40 = vld [vmem:[%s1 + $0x34] sm:$0xf]
  %v41 = vld [vmem:[%s1 + $0x38] sm:$0xf]
  %v42 = vld [vmem:[%s1 + $0x3c] sm:$0xf]
  %v59 = vunpack.c.l.b16 %v11
  %v60 = vunpack.c.l.b16 %v12
  %v61 = vunpack.c.l.b16 %v13
  %v62 = vunpack.c.l.b16 %v14
  %v63 = vunpack.c.l.b16 %v15
  %v64 = vunpack.c.l.b16 %v16
  %v65 = vunpack.c.l.b16 %v17
  %v66 = vunpack.c.l.b16 %v18
  %v67 = vunpack.c.l.b16 %v19
  %v68 = vunpack.c.l.b16 %v20
  %v69 = vunpack.c.l.b16 %v21
  %v70 = vunpack.c.l.b16 %v22
  %v71 = vunpack.c.l.b16 %v23
  %v72 = vunpack.c.l.b16 %v24
  %v73 = vunpack.c.l.b16 %v25
  %v74 = vunpack.c.l.b16 %v26
  %v75 = vpack.c.b16 %v60, %v59
  %v76 = vpack.c.b16 %v62, %v61
  %v77 = vpack.c.b16 %v64, %v63
  %v78 = vpack.c.b16 %v66, %v65
  %v79 = vpack.c.b16 %v68, %v67
  %v80 = vpack.c.b16 %v70, %v69
  %v81 = vpack.c.b16 %v72, %v71
  %v82 = vpack.c.b16 %v74, %v73
  %v107 = vunpack.c.l.b16 %v27
  %v108 = vunpack.c.l.b16 %v28
  %v109 = vunpack.c.l.b16 %v29
  %v110 = vunpack.c.l.b16 %v30
  %v111 = vunpack.c.l.b16 %v31
  %v112 = vunpack.c.l.b16 %v32
  %v113 = vunpack.c.l.b16 %v33
  %v114 = vunpack.c.l.b16 %v34
  %v115 = vunpack.c.l.b16 %v35
  %v116 = vunpack.c.l.b16 %v36
  %v117 = vunpack.c.l.b16 %v37
  %v118 = vunpack.c.l.b16 %v38
  %v119 = vunpack.c.l.b16 %v39
  %v120 = vunpack.c.l.b16 %v40
  %v121 = vunpack.c.l.b16 %v41
  %v122 = vunpack.c.l.b16 %v42
  %v123 = vpack.c.b16 %v108, %v107
  %v124 = vpack.c.b16 %v110, %v109
  %v125 = vpack.c.b16 %v112, %v111
  %v126 = vpack.c.b16 %v114, %v113
  %v127 = vpack.c.b16 %v116, %v115
  %v128 = vpack.c.b16 %v118, %v117
  %v129 = vpack.c.b16 %v120, %v119
  %v130 = vpack.c.b16 %v122, %v121
  %139 = vmatpush.bf16.msra.mxu0 %v130
  %140 = vmatpush.bf16.msra.mxu0 %v129
  %141 = vmatpush.bf16.msra.mxu0 %v128
  %142 = vmatpush.bf16.msra.mxu0 %v127
  %143 = vmatpush.bf16.msra.mxu0 %v126
  %144 = vmatpush.bf16.msra.mxu0 %v125
  %145 = vmatpush.bf16.msra.mxu0 %v124
  %146 = vmatpush.bf16.msra.mxu0 %v123
  %147 = vmatmul.bf16.gmra.mxu0 %v75
  %v148 = vpop.f32.mrf.mxu0
  %v149 = vadd.f32 0.0, %v148
  %v150 = vpop.f32.mrf.mxu0
  %v151 = vadd.f32 0.0, %v150
  %152 = vmatmul.bf16.gmra.mxu0 %v76
  %v153 = vpop.f32.mrf.mxu0
  %v154 = vadd.f32 0.0, %v153
  %v155 = vpop.f32.mrf.mxu0
  %v156 = vadd.f32 0.0, %v155
  %157 = vmatmul.bf16.gmra.mxu0 %v77
  %v158 = vpop.f32.mrf.mxu0
  %v159 = vadd.f32 0.0, %v158
  %v160 = vpop.f32.mrf.mxu0
  %v161 = vadd.f32 0.0, %v160
  %162 = vmatmul.bf16.gmra.mxu0 %v78
  %v163 = vpop.f32.mrf.mxu0
  %v164 = vadd.f32 0.0, %v163
  %v165 = vpop.f32.mrf.mxu0
  %v166 = vadd.f32 0.0, %v165
  %167 = vmatmul.bf16.gmra.mxu0 %v79
  %v168 = vpop.f32.mrf.mxu0
  %v169 = vadd.f32 0.0, %v168
  %v170 = vpop.f32.mrf.mxu0
  %v171 = vadd.f32 0.0, %v170
  %172 = vmatmul.bf16.gmra.mxu0 %v80
  %v173 = vpop.f32.mrf.mxu0
  %v174 = vadd.f32 0.0, %v173
  %v175 = vpop.f32.mrf.mxu0
  %v176 = vadd.f32 0.0, %v175
  %177 = vmatmul.bf16.gmra.mxu0 %v81
  %v178 = vpop.f32.mrf.mxu0
  %v179 = vadd.f32 0.0, %v178
  %v180 = vpop.f32.mrf.mxu0
  %v181 = vadd.f32 0.0, %v180
  %182 = vmatmul.bf16.gmra.mxu0 %v82
  %v183 = vpop.f32.mrf.mxu0
  %v184 = vadd.f32 0.0, %v183
  %v185 = vpop.f32.mrf.mxu0
  %v186 = vadd.f32 0.0, %v185
  %187 = vdwg.mxu0
  %v188 = vpack.c.bf16 %v149, %v149
  %v189 = vpack.c.bf16 %v151, %v151
  %v190 = vpack.c.bf16 %v154, %v154
  %v191 = vpack.c.bf16 %v156, %v156
  %v192 = vpack.c.bf16 %v159, %v159
  %v193 = vpack.c.bf16 %v161, %v161
  %v194 = vpack.c.bf16 %v164, %v164
  %v195 = vpack.c.bf16 %v166, %v166
  %v196 = vpack.c.bf16 %v169, %v169
  %v197 = vpack.c.bf16 %v171, %v171
  %v198 = vpack.c.bf16 %v174, %v174
  %v199 = vpack.c.bf16 %v176, %v176
  %v200 = vpack.c.bf16 %v179, %v179
  %v201 = vpack.c.bf16 %v181, %v181
  %v202 = vpack.c.bf16 %v184, %v184
  %v203 = vpack.c.bf16 %v186, %v186
  %204 = vst [vmem:[%s2] sm:$0xf] %v188
  %205 = vst [vmem:[%s2 + $0x4] sm:$0xf] %v189
  %206 = vst [vmem:[%s2 + $0x8] sm:$0xf] %v190
  %207 = vst [vmem:[%s2 + $0xc] sm:$0xf] %v191
  %208 = vst [vmem:[%s2 + $0x10] sm:$0xf] %v192
  %209 = vst [vmem:[%s2 + $0x14] sm:$0xf] %v193
  %210 = vst [vmem:[%s2 + $0x18] sm:$0xf] %v194
  %211 = vst [vmem:[%s2 + $0x1c] sm:$0xf] %v195
  %212 = vst [vmem:[%s2 + $0x20] sm:$0xf] %v196
  %213 = vst [vmem:[%s2 + $0x24] sm:$0xf] %v197
  %214 = vst [vmem:[%s2 + $0x28] sm:$0xf] %v198
  %215 = vst [vmem:[%s2 + $0x2c] sm:$0xf] %v199
  %216 = vst [vmem:[%s2 + $0x30] sm:$0xf] %v200
  %217 = vst [vmem:[%s2 + $0x34] sm:$0xf] %v201
  %218 = vst [vmem:[%s2 + $0x38] sm:$0xf] %v202
  %219 = vst [vmem:[%s2 + $0x3c] sm:$0xf] %v203
  // Predicated region
  $region10: #{gcn_forward.2} parent=0 // pred_check
    _
  $region11: #{gcn_forward.2} parent=0 // pred_check_branch
    %221 = sbr.rel (0) target = $region13
  $region12: #{gcn_forward.2} parent=0 // pred_region
    _
  $region13: #{gcn_forward.2} parent=0 // pred_fallthru
    _
  // Predicated region
  $region14: #{gcn_forward.2} parent=0 // pred_check
    _
  $region15: #{gcn_forward.2} parent=0 // pred_check_branch
    %223 = sbr.rel (0) target = $region17
  $region16: #{gcn_forward.2} parent=0 // pred_region
    _
  $region17: #{gcn_forward.2} parent=0 // pred_fallthru
    _

// kernel: gcn_forward.3
$region0: #{gcn_forward.3}
  #allocation0 [shape = 'u32[]', space=smem, size = 0x4, offset = 0x4, fixed_abs, tag = 'smem constant byte address 0x4 - core index']
  #allocation1 [shape = 'u32[72,128]{1,0:T(1,128)}', space=vmem, size = 0x9000, scoped, tag = 'internal scratch']
  #allocation2 [shape = 'f32[16,128]{1,0:T(8,128)}', space=vmem, size = 0x2000, scoped, tag = 'scratch operand']
  %s0 = inlined_call_operand.vmem [shape: bf16[16,128], index: 0, kind: input, shape index: {}]
  %s1 = inlined_call_operand.vmem [shape: bf16[128,128], index: 1, kind: input, shape index: {}]
  %s2 = inlined_call_operand.vmem [shape: f32[1,128], index: 2, kind: input, shape index: {}]
  %s3 = inlined_call_operand.hbm [shape: f32[16,128], index: 3, kind: output, shape index: {}]
  %s4 = sld [smem:[#allocation0]]
  $region30: #{gcn_forward.3} parent=0
    _
  %s6 = ssub.s32 1, %s4
  %s7 = scalar_select 0, %s6, %s4
  $region1: #{gcn_forward.3} parent=0
    #allocation3 [shape = 'u8[8192]{0}', space=vmem, size = 0x2000, scoped, tag = 'output window, operand 0, single buffered']
    #allocation4 [shape = 's32[1]{0}', space=sflag, size = 0x4, scoped, tag = 'scoped memory for gcn_forward.3']
    %8 = vsyncpa [#allocation4], 0
    // Predicated region
    $region2: #{gcn_forward.3} parent=1 // pred_check
      _
    $region3: #{gcn_forward.3} parent=1 // pred_check_branch
      %10 = sbr.rel (0) target = $region5
    $region4: #{gcn_forward.3} parent=1 // pred_region
      _
    $region5: #{gcn_forward.3} parent=1 // pred_fallthru
      _
    // Predicated region
    $region6: #{gcn_forward.3} parent=1 // pred_check
      _
    $region7: #{gcn_forward.3} parent=1 // pred_check_branch
      %12 = sbr.rel (0) target = $region9
    $region8: #{gcn_forward.3} parent=1 // pred_region
      _
    $region9: #{gcn_forward.3} parent=1 // pred_fallthru
      _
    // Predicated region
    $region10: #{gcn_forward.3} parent=1 // pred_check
      _
    $region11: #{gcn_forward.3} parent=1 // pred_check_branch
      %14 = sbr.rel (0) target = $region13
    $region12: #{gcn_forward.3} parent=1 // pred_region
      _
    $region13: #{gcn_forward.3} parent=1 // pred_fallthru
      _
    %p15 = scmp.eq.s32.totalorder 0, 0
    // Predicated region
    $region14: #{gcn_forward.3} parent=1 // pred_check
      %p16 = pneg %p15
    $region15: #{gcn_forward.3} parent=1 // pred_check_branch
      %18 = sbr.rel (%p16) target = $region17
    $region16: #{gcn_forward.3} parent=1 // pred_region
      %19 = vst [vmem:[#allocation2] sm:$0xff] 0.0
      %20 = vst [vmem:[#allocation2 + $0x8] sm:$0xff] 0.0
    $region17: #{gcn_forward.3} parent=1 // pred_fallthru
      _
    %v21 = vld [vmem:[#allocation2] sm:$0xff]
    %v22 = vld [vmem:[#allocation2 + $0x8] sm:$0xff]
    %v23 = vld [vmem:[%s0] sm:$0xf]
    %v24 = vld [vmem:[%s0 + $0x4] sm:$0xf]
    %v25 = vld [vmem:[%s1] sm:$0xf]
    %v26 = vld [vmem:[%s1 + $0x4] sm:$0xf]
    %v27 = vld [vmem:[%s1 + $0x8] sm:$0xf]
    %v28 = vld [vmem:[%s1 + $0xc] sm:$0xf]
    %v29 = vld [vmem:[%s1 + $0x10] sm:$0xf]
    %v30 = vld [vmem:[%s1 + $0x14] sm:$0xf]
    %v31 = vld [vmem:[%s1 + $0x18] sm:$0xf]
    %v32 = vld [vmem:[%s1 + $0x1c] sm:$0xf]
    %v33 = vld [vmem:[%s1 + $0x20] sm:$0xf]
    %v34 = vld [vmem:[%s1 + $0x24] sm:$0xf]
    %v35 = vld [vmem:[%s1 + $0x28] sm:$0xf]
    %v36 = vld [vmem:[%s1 + $0x2c] sm:$0xf]
    %v37 = vld [vmem:[%s1 + $0x30] sm:$0xf]
    %v38 = vld [vmem:[%s1 + $0x34] sm:$0xf]
    %v39 = vld [vmem:[%s1 + $0x38] sm:$0xf]
    %v40 = vld [vmem:[%s1 + $0x3c] sm:$0xf]
    %v43 = vunpack.c.l.b16 %v23
    %v44 = vunpack.c.l.b16 %v24
    %v45 = vpack.c.b16 %v44, %v43
    %v63 = vunpack.c.l.b16 %v25
    %v64 = vunpack.c.l.b16 %v26
    %v65 = vunpack.c.l.b16 %v27
    %v66 = vunpack.c.l.b16 %v28
    %v67 = vunpack.c.l.b16 %v29
    %v68 = vunpack.c.l.b16 %v30
    %v69 = vunpack.c.l.b16 %v31
    %v70 = vunpack.c.l.b16 %v32
    %v71 = vunpack.c.l.b16 %v33
    %v72 = vunpack.c.l.b16 %v34
    %v73 = vunpack.c.l.b16 %v35
    %v74 = vunpack.c.l.b16 %v36
    %v75 = vunpack.c.l.b16 %v37
    %v76 = vunpack.c.l.b16 %v38
    %v77 = vunpack.c.l.b16 %v39
    %v78 = vunpack.c.l.b16 %v40
    %v79 = vpack.c.b16 %v64, %v63
    %v80 = vpack.c.b16 %v66, %v65
    %v81 = vpack.c.b16 %v68, %v67
    %v82 = vpack.c.b16 %v70, %v69
    %v83 = vpack.c.b16 %v72, %v71
    %v84 = vpack.c.b16 %v74, %v73
    %v85 = vpack.c.b16 %v76, %v75
    %v86 = vpack.c.b16 %v78, %v77
    %95 = vmatpush.bf16.msra.mxu0 %v86
    %96 = vmatpush.bf16.msra.mxu0 %v85
    %97 = vmatpush.bf16.msra.mxu0 %v84
    %98 = vmatpush.bf16.msra.mxu0 %v83
    %99 = vmatpush.bf16.msra.mxu0 %v82
    %100 = vmatpush.bf16.msra.mxu0 %v81
    %101 = vmatpush.bf16.msra.mxu0 %v80
    %102 = vmatpush.bf16.msra.mxu0 %v79
    %103 = vmatmul.bf16.gmra.mxu0 %v45
    %v104 = vpop.f32.mrf.mxu0
    %v105 = vadd.f32 0.0, %v104
    %v106 = vpop.f32.mrf.mxu0
    %v107 = vadd.f32 0.0, %v106
    %108 = vdwg.mxu0
    %v109 = vadd.f32 %v21, %v105
    %v110 = vadd.f32 %v22, %v107
    %111 = vst [vmem:[#allocation2] sm:$0xff] %v109
    %112 = vst [vmem:[#allocation2 + $0x8] sm:$0xff] %v110
    // Predicated region
    $region18: #{gcn_forward.3} parent=1 // pred_check
      %p113 = pneg %p15
    $region19: #{gcn_forward.3} parent=1 // pred_check_branch
      %115 = sbr.rel (%p113) target = $region21
    $region20: #{gcn_forward.3} parent=1 // pred_region
      %v116 = vld [vmem:[#allocation2] sm:$0xff]
      %v117 = vld [vmem:[#allocation2 + $0x8] sm:$0xff]
      %v118 = vld [vmem:[%s2] sm:$0x1]
      %v120 = vperm.slane %v118, 0
      %v122 = vadd.f32 %v116, %v120
      %v123 = vadd.f32 %v117, %v120
      %124 = vst [vmem:[#allocation3] sm:$0xff] %v122
      %125 = vst [vmem:[#allocation3 + $0x8] sm:$0xff] %v123
    $region21: #{gcn_forward.3} parent=1 // pred_fallthru
      _
    // Predicated region
    $region22: #{gcn_forward.3} parent=1 // pred_check
      _
    $region23: #{gcn_forward.3} parent=1 // pred_check_branch
      %127 = sbr.rel (0) target = $region25
    $region24: #{gcn_forward.3} parent=1 // pred_region
      %129 = vsyncadd [#allocation4], 0
      %s130 = sshll.u32 [#allocation3], 4
      %s131 = int_to_ptr.vmem [resolvable:$true] %s130
      %s132 = sshll.u32 %s3, 4
      %s133 = int_to_ptr.hbm [resolvable:$true] %s132
      %138 = dma.vmem_to_hbm [thread:$0]  %s131, 256, %s133, [#allocation4], 128, 128, 8
    $region25: #{gcn_forward.3} parent=1 // pred_fallthru
      _
    // Predicated region
    $region26: #{gcn_forward.3} parent=1 // pred_check
      _
    $region27: #{gcn_forward.3} parent=1 // pred_check_branch
      %140 = sbr.rel (0) target = $region29
    $region28: #{gcn_forward.3} parent=1 // pred_region
      %142 = dma.done [#allocation4], 256
    $region29: #{gcn_forward.3} parent=1 // pred_fallthru
      _
    %143 = vsyncpa [#allocation4], 1

</llo_original>
